<compile_context>
chip_gen: v7x
topology: tpu7x:2x2x1
jax: 0.10.0
libtpu: 0.0.40
codegen_flags: <defaults>
</compile_context>

<pallas_src>
import functools

import numpy as np
import jax
import jax.numpy as jnp
from jax import lax
from jax.experimental import pallas as pl
from jax.experimental.pallas import tpu as pltpu

BUCKET_BINS = [0, 1, 2, 3, 4, 5, 7, 8, 9, 10, 15, 16, 31, 32, 63, 64]
LANE = 128
SUBLANE = 8


# ------------------------------ fused kernel -------------------------------

def ranker_fused_kernel(spans_ref, aux_ref, x_ref,
                        w1s_ref, w1a_ref, b1_ref,
                        w2_ref, b2_ref, w3_ref, b3_ref,
                        out_ref, *, n_span_class, n_type_class):
    Np = spans_ref.shape[0]
    S = x_ref.shape[1]
    out_w = out_ref.shape[-1]

    # ---- span selector matrices built on-chip from runtime span indices ----
    s_col = spans_ref[:, 0:1]                                  # (Np, 1) int32
    e_col = spans_ref[:, 1:2]                                  # (Np, 1) int32
    lo = jnp.minimum(s_col, e_col)
    hi = jnp.maximum(s_col, e_col)
    tok = lax.broadcasted_iota(jnp.int32, (Np, S), 1)          # (Np, S)
    in_span = (tok >= lo) & (tok <= hi)
    inv_w = 1.0 / (hi - lo + 1).astype(jnp.float32)            # (Np, 1)
    mean_sel = jnp.where(in_span, inv_w, 0.0)                  # mean-pool weights
    start_sel = (tok == s_col).astype(jnp.float32)             # one-hot(start)
    end_sel = (tok == e_col).astype(jnp.float32)               # one-hot(end)
    # single (3*Np, S) selector -> one MXU push for all three picks
    sel = jnp.concatenate([mean_sel, start_sel, end_sel],
                          axis=0).astype(jnp.bfloat16)         # (3Np, S)

    xb = x_ref[0]                                              # (S, H) bf16
    picked = jnp.dot(sel, xb, preferred_element_type=jnp.float32)   # (3Np, H)
    feats = jnp.concatenate(
        [picked[0:Np], picked[Np:2 * Np], picked[2 * Np:3 * Np]], axis=1)  # (Np, 3H)

    # fused (block-diagonal) FFNN for both heads; bf16 MXU operands, f32 acc
    h = (jnp.dot(feats.astype(jnp.bfloat16), w1s_ref[...],
                 preferred_element_type=jnp.float32)
         + jnp.dot(aux_ref[...], w1a_ref[...],
                   preferred_element_type=jnp.float32)
         + b1_ref[...])
    h = jnp.maximum(h, 0.0)          # ReLU (Dropout p=0.5 -> identity in eval)
    h = jnp.dot(h.astype(jnp.bfloat16), w2_ref[...],
                preferred_element_type=jnp.float32) + b2_ref[...]
    h = jnp.maximum(h, 0.0)          # ReLU (Dropout p=0.5 -> identity in eval)
    logits = jnp.dot(h.astype(jnp.bfloat16), w3_ref[...],
                     preferred_element_type=jnp.float32) + b3_ref[...]   # (Np, out_w)

    # two masked softmaxes over the lane-padded logits (pad lanes -> 0)
    lane = lax.broadcasted_iota(jnp.int32, (Np, out_w), 1)
    g_span = lane < n_span_class
    g_type = (lane >= n_span_class) & (lane < n_span_class + n_type_class)
    g_any = g_span | g_type
    neg = jnp.float32(-1e30)
    m_span = jnp.max(jnp.where(g_span, logits, neg), axis=-1, keepdims=True)
    m_type = jnp.max(jnp.where(g_type, logits, neg), axis=-1, keepdims=True)
    m = jnp.where(g_span, m_span, jnp.where(g_type, m_type, 0.0))
    e = jnp.where(g_any, jnp.exp(logits - m), 0.0)
    s_span = jnp.sum(jnp.where(g_span, e, 0.0), axis=-1, keepdims=True)
    s_type = jnp.sum(jnp.where(g_type, e, 0.0), axis=-1, keepdims=True)
    denom = jnp.where(g_span, s_span, jnp.where(g_type, s_type, 1.0))
    probs = e / denom                         # exact normalization
    out_ref[...] = probs.reshape(1, Np, out_w)   # lane-dense, unmasked store


def _fused_ranker_call(spans, aux, bert_states, head, n_span_class, n_type_class):
    B, S, H = bert_states.shape
    Np = spans.shape[0]
    A = aux.shape[1]
    hid = head["w2"].shape[0]
    out_w = head["w3"].shape[1]

    def full_spec(arr):
        return pl.BlockSpec(arr.shape, lambda b, _n=arr.ndim: (0,) * _n)

    flops = 2 * B * Np * (3 * S * H + 3 * H * hid + A * hid + hid * hid + hid * out_w)
    transcendentals = B * Np * out_w
    bytes_accessed = (B * S * H * bert_states.dtype.itemsize
                      + B * Np * out_w * 4
                      + Np * 2 * 4 + Np * A * 4
                      + (3 * H * hid + hid * hid + hid * out_w) * 2
                      + (A * hid + 2 * hid + out_w) * 4)

    kernel = functools.partial(ranker_fused_kernel,
                               n_span_class=n_span_class,
                               n_type_class=n_type_class)
    return pl.pallas_call(
        kernel,
        out_shape=jax.ShapeDtypeStruct((B, Np, out_w), jnp.float32),
        grid=(B,),
        in_specs=[
            full_spec(spans), full_spec(aux),
            pl.BlockSpec((1, S, H), lambda b: (b, 0, 0)),
            full_spec(head["w1_sel"]), full_spec(head["w1_aux"]), full_spec(head["b1"]),
            full_spec(head["w2"]), full_spec(head["b2"]),
            full_spec(head["w3"]), full_spec(head["b3"]),
        ],
        out_specs=pl.BlockSpec((1, Np, out_w), lambda b: (b, 0, 0)),
        compiler_params=pltpu.CompilerParams(dimension_semantics=("parallel",)),
        cost_estimate=pl.CostEstimate(flops=flops,
                                      transcendentals=transcendentals,
                                      bytes_accessed=bytes_accessed),
    )(spans, aux, bert_states,
      head["w1_sel"], head["w1_aux"], head["b1"],
      head["w2"], head["b2"], head["w3"], head["b3"])


# --------------------------- parameter creation ----------------------------

def xavier_normal(key, shape):
    fan_in, fan_out = shape
    std = float(np.sqrt(2.0 / (fan_in + fan_out)))
    return jax.random.normal(key, shape, jnp.float32) * std


def fuse_heads(f1, f2, hidden, pos_dim, width_dim):
    """Fuse span_ffnn / span_type_ffnn into one block-diagonal head.

    The first Linear is split by feature group so the kernel never materializes
    the (3H + 2P + W)-wide concatenated span vector; the bert-state part is
    pre-stacked [mean; start; end] for a single K=3H dot.
    """
    h1 = f1["w1"].shape[1]; h2 = f2["w1"].shape[1]
    c1 = f1["w3"].shape[1]; c2 = f2["w3"].shape[1]
    hid = h1 + h2
    out_w = max(LANE, -(-(c1 + c2) // LANE) * LANE)   # lane-dense logits width
    H, P, W = hidden, pos_dim, width_dim

    # row blocks of w1 follow the torch concat order:
    # [mean | x_start | pos0 | x_end | pos1 | width]
    def blocks(w):
        return (w[0:H], w[H:2 * H], w[2 * H:2 * H + P],
                w[2 * H + P:3 * H + P], w[3 * H + P:3 * H + 2 * P],
                w[3 * H + 2 * P:3 * H + 2 * P + W])

    m1, s1, p01, e1, p11, wd1 = blocks(f1["w1"])
    m2, s2, p02, e2, p12, wd2 = blocks(f2["w1"])
    cat = lambda a, b: jnp.concatenate([a, b], axis=1)

    # bert-state selector part of the first Linear, stacked [mean; start; end]
    w1_sel = jnp.concatenate([cat(m1, m2), cat(s1, s2), cat(e1, e2)], axis=0)   # (3H, hid)
    # aux feature order used by the wrapper: [pos0 | pos1 | width]
    w1_aux = jnp.concatenate(
        [cat(p01, p02), cat(p11, p12), cat(wd1, wd2)], axis=0)                  # (2P+W, hid)

    b1 = jnp.concatenate([f1["b1"], f2["b1"]]).reshape(1, hid)
    w2 = (jnp.zeros((hid, hid), jnp.float32)
          .at[:h1, :h1].set(f1["w2"]).at[h1:, h1:].set(f2["w2"]))
    b2 = jnp.concatenate([f1["b2"], f2["b2"]]).reshape(1, hid)
    w3 = (jnp.zeros((hid, out_w), jnp.float32)
          .at[:h1, :c1].set(f1["w3"]).at[h1:, c1:c1 + c2].set(f2["w3"]))
    b3 = (jnp.zeros((1, out_w), jnp.float32)
          .at[0, :c1].set(f1["b3"]).at[0, c1:c1 + c2].set(f2["b3"]))
    return dict(
        w1_sel=w1_sel.astype(jnp.bfloat16),   # bf16 MXU operand
        w1_aux=w1_aux,                        # small f32 path (aux stays f32)
        b1=b1,
        w2=w2.astype(jnp.bfloat16), b2=b2,
        w3=w3.astype(jnp.bfloat16), b3=b3,
    )


def make_params(key, vocab, hidden, pos_vocab, width_dim, pos_dim,
                span_dim, ffnn_hidden, span_nclass, span_type_nclass):
    ks = jax.random.split(key, 12)
    params = {
        # stand-in for BERT: deterministic token embedding table
        "tok_emb": jax.random.normal(ks[0], (vocab, hidden), jnp.float32) * 0.02,
        # nn.Embedding defaults: N(0, 1)
        "width_emb": jax.random.normal(ks[1], (len(BUCKET_BINS), width_dim), jnp.float32),
        "pos_emb": jax.random.normal(ks[2], (pos_vocab, pos_dim), jnp.float32),
    }
    # Linear weights xavier_normal (reset_parameters); biases zero
    params["span_ffnn"] = dict(
        w1=xavier_normal(ks[3], (span_dim, ffnn_hidden)), b1=jnp.zeros((ffnn_hidden,), jnp.float32),
        w2=xavier_normal(ks[4], (ffnn_hidden, ffnn_hidden)), b2=jnp.zeros((ffnn_hidden,), jnp.float32),
        w3=xavier_normal(ks[5], (ffnn_hidden, span_nclass)), b3=jnp.zeros((span_nclass,), jnp.float32),
    )
    params["span_type_ffnn"] = dict(
        w1=xavier_normal(ks[6], (span_dim, ffnn_hidden)), b1=jnp.zeros((ffnn_hidden,), jnp.float32),
        w2=xavier_normal(ks[7], (ffnn_hidden, ffnn_hidden)), b2=jnp.zeros((ffnn_hidden,), jnp.float32),
        w3=xavier_normal(ks[8], (ffnn_hidden, span_type_nclass)), b3=jnp.zeros((span_type_nclass,), jnp.float32),
    )
    params["fused_head"] = fuse_heads(params["span_ffnn"], params["span_type_ffnn"],
                                      hidden, pos_dim, width_dim)
    return params


# ------------------------------ forward pass -------------------------------

@jax.jit
def ranker_forward(params, input_ids, span_indices, span_postag_labels):
    """Mirrors Ranker.forward. Returns (span_probs, span_type_probs)."""
    B, S = input_ids.shape
    # TODO(synk): pretrained BERT encoder replaced by a token-embedding lookup.
    bert_states = jnp.take(params["tok_emb"], input_ids, axis=0)        # (B, S, H)

    # module only reads spans_indices[0] / span_pt_labels[0]
    spans = jnp.asarray(span_indices)[0].astype(jnp.int32)              # (N, 2)
    N = spans.shape[0]
    N_pad = max(SUBLANE, -(-N // SUBLANE) * SUBLANE)                    # sublane-align
    if N_pad != N:
        spans = jnp.concatenate(
            [spans, jnp.zeros((N_pad - N, 2), jnp.int32)], axis=0)      # dummy (0,0) spans
    starts = spans[:, 0]
    ends = spans[:, 1]

    widths = jnp.abs(ends - starts + 1)
    bins = jnp.asarray(BUCKET_BINS, jnp.int32)
    bucket_ix = jnp.sum((widths[:, None] >= bins[None, :]).astype(jnp.int32), axis=1) - 1
    width_emb = jnp.take(params["width_emb"], bucket_ix, axis=0)        # (N_pad, W)

    pt = jnp.asarray(span_postag_labels)[0].astype(jnp.int32)           # (S,)
    pos0 = jnp.take(params["pos_emb"], jnp.take(pt, starts), axis=0)    # (N_pad, P)
    pos1 = jnp.take(params["pos_emb"], jnp.take(pt, ends), axis=0)      # (N_pad, P)

    # batch-independent span features, in the order [pos0 | pos1 | width]
    aux = jnp.concatenate([pos0, pos1, width_emb], axis=-1)             # (N_pad, 2P+W)

    n_span_class = params["span_ffnn"]["w3"].shape[1]
    n_type_class = params["span_type_ffnn"]["w3"].shape[1]

    probs = _fused_ranker_call(spans, aux, bert_states.astype(jnp.bfloat16),
                               params["fused_head"],
                               n_span_class, n_type_class)              # (B, N_pad, 128)

    span_probs = probs[:, :N, :n_span_class]
    span_type_probs = probs[:, :N, n_span_class:n_span_class + n_type_class]
    return span_probs, span_type_probs


# ------------------------- pure-JAX reference model -------------------------

def ranker_forward_reference(params, input_ids, span_indices, span_postag_labels):
    """Direct (unfused) translation of the PyTorch module, for checking."""
    bert_states = jnp.take(params["tok_emb"], jnp.asarray(input_ids), axis=0)
    B = bert_states.shape[0]
    spans = np.asarray(span_indices)[0]
    pt = np.asarray(span_postag_labels)[0]
    x_spans = []
    for s0, s1 in spans:
        s0, s1 = int(s0), int(s1)
        width = abs(s1 - s0 + 1)
        em = [ix for ix, v in enumerate(BUCKET_BINS) if width >= v][-1]
        wemb = jnp.broadcast_to(params["width_emb"][em], (B, params["width_emb"].shape[1]))
        p0 = jnp.broadcast_to(params["pos_emb"][int(pt[s0])], (B, params["pos_emb"].shape[1]))
        p1 = jnp.broadcast_to(params["pos_emb"][int(pt[s1])], (B, params["pos_emb"].shape[1]))
        mean_vec = jnp.mean(bert_states[:, s0:s1 + 1, :], axis=1)
        x_spans.append(jnp.concatenate(
            [mean_vec, bert_states[:, s0, :], p0, bert_states[:, s1, :], p1, wemb], axis=-1))
    x_spans = jnp.stack(x_spans, axis=1)                                # (B, N, span_dim)

    hp = jax.lax.Precision.HIGHEST

    def head(f, x):
        h = jnp.maximum(jnp.dot(x, f["w1"], precision=hp) + f["b1"], 0.0)
        h = jnp.maximum(jnp.dot(h, f["w2"], precision=hp) + f["b2"], 0.0)
        z = jnp.dot(h, f["w3"], precision=hp) + f["b3"]
        return jax.nn.softmax(z, axis=-1)

    return head(params["span_ffnn"], x_spans), head(params["span_type_ffnn"], x_spans)


# ----------------------------------- main -----------------------------------

if __name__ == "__main__":
    B, S = 2, 16                 # batch, sequence length
    H = 32                       # "bert" hidden size (encoding_dim)
    WIDTH_DIM, POS_DIM = 8, 8    # span_width / span_postag embedding dims
    FFNN_HIDDEN = 32
    SPAN_NCLASS, SPAN_TYPE_NCLASS = 4, 6
    VOCAB = 50
    POS_NUM = 20                 # ZHPosTaging.pos_num
    SPAN_DIM = H * 3 + WIDTH_DIM + POS_DIM * 2   # = 120

    key = jax.random.PRNGKey(0)
    kp, kid, kpos = jax.random.split(key, 3)

    params = make_params(kp, VOCAB, H, POS_NUM + 1, WIDTH_DIM, POS_DIM,
                         SPAN_DIM, FFNN_HIDDEN, SPAN_NCLASS, SPAN_TYPE_NCLASS)

    input_ids = jax.random.randint(kid, (B, S), 0, VOCAB, dtype=jnp.int32)

    # span indices: (B, span_num, 2); only the first batch row is consumed
    spans0 = [(0, 3), (2, 2), (4, 9), (5, 15), (1, 8), (10, 15)]
    span_indices = jnp.asarray(np.stack([np.asarray(spans0, np.int32)] * B, axis=0))

    # POS-tag labels per token: (B, S) ints in [1, POS_NUM]
    pos_labels = jax.random.randint(kpos, (B, S), 1, POS_NUM + 1, dtype=jnp.int32)

    span_probs, span_type_probs = ranker_forward(
        params, input_ids, span_indices, pos_labels)
    jax.block_until_ready(span_probs)
    jax.block_until_ready(span_type_probs)

    N = len(spans0)
    assert span_probs.shape == (B, N, SPAN_NCLASS)
    assert span_type_probs.shape == (B, N, SPAN_TYPE_NCLASS)

    sp = np.asarray(span_probs)
    stp = np.asarray(span_type_probs)
    # softmax outputs sum to 1 (exact division in-kernel)
    assert np.allclose(sp.sum(-1), 1.0, atol=2e-3)
    assert np.allclose(stp.sum(-1), 1.0, atol=2e-3)

    # compare against the straightforward (unfused, f32) JAX reference
    ref_sp, ref_stp = ranker_forward_reference(params, input_ids, span_indices, pos_labels)
    assert np.allclose(sp, np.asarray(ref_sp), atol=2e-2, rtol=2e-2)
    assert np.allclose(stp, np.asarray(ref_stp), atol=2e-2, rtol=2e-2)

    print("KERNEL_OK")
</pallas_src>

<mosaic_0001>
module attributes {stable_mosaic.version = 11 : i64} {
  func.func @ranker_fused_kernel(%arg0: i32, %arg1: memref<8x2xi32, #tpu.memory_space<vmem>>, %arg2: memref<8x24xf32, #tpu.memory_space<vmem>>, %arg3: memref<1x16x32xbf16, #tpu.memory_space<vmem>>, %arg4: memref<96x64xbf16, #tpu.memory_space<vmem>>, %arg5: memref<24x64xf32, #tpu.memory_space<vmem>>, %arg6: memref<1x64xf32, #tpu.memory_space<vmem>>, %arg7: memref<64x64xbf16, #tpu.memory_space<vmem>>, %arg8: memref<1x64xf32, #tpu.memory_space<vmem>>, %arg9: memref<64x128xbf16, #tpu.memory_space<vmem>>, %arg10: memref<1x128xf32, #tpu.memory_space<vmem>>, %arg11: memref<1x8x128xf32, #tpu.memory_space<vmem>>) attributes {dimension_semantics = [#tpu.dimension_semantics<parallel>], iteration_bounds = array<i64: 2>, scalar_prefetch = 0 : i64, scratch_operands = 0 : i64, tpu.core_type = #tpu.core_type<tc>, window_params = [{pipeline_mode = #tpu.pipeline_mode<synchronous>, transform_indices = @transform_0, window_bounds = array<i64: 8, 2>}, {pipeline_mode = #tpu.pipeline_mode<synchronous>, transform_indices = @transform_1, window_bounds = array<i64: 8, 24>}, {transform_indices = @transform_2, window_bounds = array<i64: 1, 16, 32>}, {pipeline_mode = #tpu.pipeline_mode<synchronous>, transform_indices = @transform_3, window_bounds = array<i64: 96, 64>}, {pipeline_mode = #tpu.pipeline_mode<synchronous>, transform_indices = @transform_4, window_bounds = array<i64: 24, 64>}, {pipeline_mode = #tpu.pipeline_mode<synchronous>, transform_indices = @transform_5, window_bounds = array<i64: 1, 64>}, {pipeline_mode = #tpu.pipeline_mode<synchronous>, transform_indices = @transform_6, window_bounds = array<i64: 64, 64>}, {pipeline_mode = #tpu.pipeline_mode<synchronous>, transform_indices = @transform_7, window_bounds = array<i64: 1, 64>}, {pipeline_mode = #tpu.pipeline_mode<synchronous>, transform_indices = @transform_8, window_bounds = array<i64: 64, 128>}, {pipeline_mode = #tpu.pipeline_mode<synchronous>, transform_indices = @transform_9, window_bounds = array<i64: 1, 128>}, {transform_indices = @transform_10, window_bounds = array<i64: 1, 8, 128>}]} {
    %c0 = arith.constant 0 : index
    %c0_0 = arith.constant 0 : index
    %0 = vector.load %arg1[%c0, %c0_0] : memref<8x2xi32, #tpu.memory_space<vmem>>, vector<8x1xi32>
    %c0_1 = arith.constant 0 : index
    %c1 = arith.constant 1 : index
    %1 = vector.load %arg1[%c0_1, %c1] : memref<8x2xi32, #tpu.memory_space<vmem>>, vector<8x1xi32>
    %2 = arith.minsi %0, %1 : vector<8x1xi32>
    %3 = arith.maxsi %0, %1 : vector<8x1xi32>
    %4 = tpu.iota {dimensions = array<i32: 1>} : vector<8x16xi32>
    %5 = vector.broadcast %2 : vector<8x1xi32> to vector<8x16xi32>
    %6 = arith.cmpi sge, %4, %5 : vector<8x16xi32>
    %7 = vector.broadcast %3 : vector<8x1xi32> to vector<8x16xi32>
    %8 = arith.cmpi sle, %4, %7 : vector<8x16xi32>
    %9 = arith.andi %6, %8 : vector<8x16xi1>
    %10 = arith.subi %3, %2 : vector<8x1xi32>
    %c1_i32 = arith.constant 1 : i32
    %11 = vector.broadcast %c1_i32 : i32 to vector<8x1xi32>
    %12 = arith.addi %10, %11 : vector<8x1xi32>
    %13 = arith.sitofp %12 : vector<8x1xi32> to vector<8x1xf32>
    %cst = arith.constant 1.000000e+00 : f32
    %14 = vector.broadcast %cst : f32 to vector<8x1xf32>
    %15 = arith.divf %14, %13 : vector<8x1xf32>
    %cst_2 = arith.constant 0.000000e+00 : f32
    %16 = vector.shape_cast %15 : vector<8x1xf32> to vector<8x1xf32>
    %17 = vector.broadcast %16 : vector<8x1xf32> to vector<8x16xf32>
    %18 = vector.broadcast %cst_2 : f32 to vector<8x16xf32>
    %19 = arith.select %9, %17, %18 : vector<8x16xi1>, vector<8x16xf32>
    %20 = vector.broadcast %0 : vector<8x1xi32> to vector<8x16xi32>
    %21 = arith.cmpi eq, %4, %20 : vector<8x16xi32>
    %22 = arith.extui %21 : vector<8x16xi1> to vector<8x16xi32>
    %23 = arith.sitofp %22 : vector<8x16xi32> to vector<8x16xf32>
    %24 = vector.broadcast %1 : vector<8x1xi32> to vector<8x16xi32>
    %25 = arith.cmpi eq, %4, %24 : vector<8x16xi32>
    %26 = arith.extui %25 : vector<8x16xi1> to vector<8x16xi32>
    %27 = arith.sitofp %26 : vector<8x16xi32> to vector<8x16xf32>
    %28 = tpu.concatenate %19, %23, %27 in 0 : vector<8x16xf32>, vector<8x16xf32>, vector<8x16xf32> -> vector<24x16xf32>
    %29 = arith.truncf %28 : vector<24x16xf32> to vector<24x16xbf16>
    %c0_3 = arith.constant 0 : index
    %c0_4 = arith.constant 0 : index
    %c0_5 = arith.constant 0 : index
    %30 = vector.load %arg3[%c0_3, %c0_4, %c0_5] : memref<1x16x32xbf16, #tpu.memory_space<vmem>>, vector<1x16x32xbf16>
    %31 = vector.shape_cast %30 : vector<1x16x32xbf16> to vector<16x32xbf16>
    %cst_6 = arith.constant dense<0.000000e+00> : vector<24x32xf32>
    %32 = tpu.matmul %29, %31, %cst_6 {dimension_numbers = #tpu.dot_dimension_numbers<[1], [0], [0], [1], [0, 0, 1, 1], [], []>} : vector<24x16xbf16>, vector<16x32xbf16>, vector<24x32xf32> -> vector<24x32xf32>
    %33 = vector.extract_strided_slice %32 {offsets = [0, 0], sizes = [8, 32], strides = [1, 1]} : vector<24x32xf32> to vector<8x32xf32>
    %34 = vector.extract_strided_slice %32 {offsets = [8, 0], sizes = [8, 32], strides = [1, 1]} : vector<24x32xf32> to vector<8x32xf32>
    %35 = vector.extract_strided_slice %32 {offsets = [16, 0], sizes = [8, 32], strides = [1, 1]} : vector<24x32xf32> to vector<8x32xf32>
    %36 = tpu.concatenate %33, %34, %35 in 1 : vector<8x32xf32>, vector<8x32xf32>, vector<8x32xf32> -> vector<8x96xf32>
    %37 = arith.truncf %36 : vector<8x96xf32> to vector<8x96xbf16>
    %c0_7 = arith.constant 0 : index
    %c0_8 = arith.constant 0 : index
    %38 = vector.load %arg4[%c0_7, %c0_8] : memref<96x64xbf16, #tpu.memory_space<vmem>>, vector<96x64xbf16>
    %cst_9 = arith.constant dense<0.000000e+00> : vector<8x64xf32>
    %39 = tpu.matmul %37, %38, %cst_9 {dimension_numbers = #tpu.dot_dimension_numbers<[1], [0], [0], [1], [0, 0, 1, 1], [], []>} : vector<8x96xbf16>, vector<96x64xbf16>, vector<8x64xf32> -> vector<8x64xf32>
    %c0_10 = arith.constant 0 : index
    %c0_11 = arith.constant 0 : index
    %40 = vector.load %arg2[%c0_10, %c0_11] : memref<8x24xf32, #tpu.memory_space<vmem>>, vector<8x24xf32>
    %c0_12 = arith.constant 0 : index
    %c0_13 = arith.constant 0 : index
    %41 = vector.load %arg5[%c0_12, %c0_13] : memref<24x64xf32, #tpu.memory_space<vmem>>, vector<24x64xf32>
    %cst_14 = arith.constant dense<0.000000e+00> : vector<8x64xf32>
    %42 = tpu.matmul %40, %41, %cst_14 {dimension_numbers = #tpu.dot_dimension_numbers<[1], [0], [0], [1], [0, 0, 1, 1], [], []>} : vector<8x24xf32>, vector<24x64xf32>, vector<8x64xf32> -> vector<8x64xf32>
    %43 = arith.addf %39, %42 : vector<8x64xf32>
    %c0_15 = arith.constant 0 : index
    %c0_16 = arith.constant 0 : index
    %44 = vector.load %arg6[%c0_15, %c0_16] : memref<1x64xf32, #tpu.memory_space<vmem>>, vector<1x64xf32>
    %45 = vector.broadcast %44 : vector<1x64xf32> to vector<8x64xf32>
    %46 = arith.addf %43, %45 : vector<8x64xf32>
    %cst_17 = arith.constant 0.000000e+00 : f32
    %47 = vector.broadcast %cst_17 : f32 to vector<8x64xf32>
    %48 = arith.maximumf %46, %47 : vector<8x64xf32>
    %49 = arith.truncf %48 : vector<8x64xf32> to vector<8x64xbf16>
    %c0_18 = arith.constant 0 : index
    %c0_19 = arith.constant 0 : index
    %50 = vector.load %arg7[%c0_18, %c0_19] : memref<64x64xbf16, #tpu.memory_space<vmem>>, vector<64x64xbf16>
    %cst_20 = arith.constant dense<0.000000e+00> : vector<8x64xf32>
    %51 = tpu.matmul %49, %50, %cst_20 {dimension_numbers = #tpu.dot_dimension_numbers<[1], [0], [0], [1], [0, 0, 1, 1], [], []>} : vector<8x64xbf16>, vector<64x64xbf16>, vector<8x64xf32> -> vector<8x64xf32>
    %c0_21 = arith.constant 0 : index
    %c0_22 = arith.constant 0 : index
    %52 = vector.load %arg8[%c0_21, %c0_22] : memref<1x64xf32, #tpu.memory_space<vmem>>, vector<1x64xf32>
    %53 = vector.broadcast %52 : vector<1x64xf32> to vector<8x64xf32>
    %54 = arith.addf %51, %53 : vector<8x64xf32>
    %cst_23 = arith.constant 0.000000e+00 : f32
    %55 = vector.broadcast %cst_23 : f32 to vector<8x64xf32>
    %56 = arith.maximumf %54, %55 : vector<8x64xf32>
    %57 = arith.truncf %56 : vector<8x64xf32> to vector<8x64xbf16>
    %c0_24 = arith.constant 0 : index
    %c0_25 = arith.constant 0 : index
    %58 = vector.load %arg9[%c0_24, %c0_25] : memref<64x128xbf16, #tpu.memory_space<vmem>>, vector<64x128xbf16>
    %cst_26 = arith.constant dense<0.000000e+00> : vector<8x128xf32>
    %59 = tpu.matmul %57, %58, %cst_26 {dimension_numbers = #tpu.dot_dimension_numbers<[1], [0], [0], [1], [0, 0, 1, 1], [], []>} : vector<8x64xbf16>, vector<64x128xbf16>, vector<8x128xf32> -> vector<8x128xf32>
    %c0_27 = arith.constant 0 : index
    %c0_28 = arith.constant 0 : index
    %60 = vector.load %arg10[%c0_27, %c0_28] : memref<1x128xf32, #tpu.memory_space<vmem>>, vector<1x128xf32>
    %61 = vector.broadcast %60 : vector<1x128xf32> to vector<8x128xf32>
    %62 = arith.addf %59, %61 : vector<8x128xf32>
    %63 = tpu.iota {dimensions = array<i32: 1>} : vector<8x128xi32>
    %c4_i32 = arith.constant 4 : i32
    %64 = vector.broadcast %c4_i32 : i32 to vector<8x128xi32>
    %65 = arith.cmpi slt, %63, %64 : vector<8x128xi32>
    %c4_i32_29 = arith.constant 4 : i32
    %66 = vector.broadcast %c4_i32_29 : i32 to vector<8x128xi32>
    %67 = arith.cmpi sge, %63, %66 : vector<8x128xi32>
    %c10_i32 = arith.constant 10 : i32
    %68 = vector.broadcast %c10_i32 : i32 to vector<8x128xi32>
    %69 = arith.cmpi slt, %63, %68 : vector<8x128xi32>
    %70 = arith.andi %67, %69 : vector<8x128xi1>
    %71 = arith.ori %65, %70 : vector<8x128xi1>
    %cst_30 = arith.constant -1.000000e+30 : f32
    %72 = vector.broadcast %cst_30 : f32 to vector<8x128xf32>
    %73 = arith.select %65, %62, %72 : vector<8x128xi1>, vector<8x128xf32>
    %cst_31 = arith.constant dense<0xFF800000> : vector<8xf32>
    %74 = vector.multi_reduction <maximumf>, %73, %cst_31 [1] : vector<8x128xf32> to vector<8xf32>
    %75 = vector.shape_cast %74 : vector<8xf32> to vector<8x1xf32>
    %cst_32 = arith.constant -1.000000e+30 : f32
    %76 = vector.broadcast %cst_32 : f32 to vector<8x128xf32>
    %77 = arith.select %70, %62, %76 : vector<8x128xi1>, vector<8x128xf32>
    %cst_33 = arith.constant dense<0xFF800000> : vector<8xf32>
    %78 = vector.multi_reduction <maximumf>, %77, %cst_33 [1] : vector<8x128xf32> to vector<8xf32>
    %79 = vector.shape_cast %78 : vector<8xf32> to vector<8x1xf32>
    %cst_34 = arith.constant 0.000000e+00 : f32
    %80 = vector.shape_cast %79 : vector<8x1xf32> to vector<8x1xf32>
    %81 = vector.broadcast %80 : vector<8x1xf32> to vector<8x128xf32>
    %82 = vector.broadcast %cst_34 : f32 to vector<8x128xf32>
    %83 = arith.select %70, %81, %82 : vector<8x128xi1>, vector<8x128xf32>
    %84 = vector.shape_cast %75 : vector<8x1xf32> to vector<8x1xf32>
    %85 = vector.broadcast %84 : vector<8x1xf32> to vector<8x128xf32>
    %86 = arith.select %65, %85, %83 : vector<8x128xi1>, vector<8x128xf32>
    %87 = arith.subf %62, %86 : vector<8x128xf32>
    %88 = math.exp %87 : vector<8x128xf32>
    %cst_35 = arith.constant 0.000000e+00 : f32
    %89 = vector.broadcast %cst_35 : f32 to vector<8x128xf32>
    %90 = arith.select %71, %88, %89 : vector<8x128xi1>, vector<8x128xf32>
    %cst_36 = arith.constant 0.000000e+00 : f32
    %91 = vector.broadcast %cst_36 : f32 to vector<8x128xf32>
    %92 = arith.select %65, %90, %91 : vector<8x128xi1>, vector<8x128xf32>
    %cst_37 = arith.constant dense<0.000000e+00> : vector<8xf32>
    %93 = vector.multi_reduction <add>, %92, %cst_37 [1] : vector<8x128xf32> to vector<8xf32>
    %94 = vector.shape_cast %93 : vector<8xf32> to vector<8x1xf32>
    %cst_38 = arith.constant 0.000000e+00 : f32
    %95 = vector.broadcast %cst_38 : f32 to vector<8x128xf32>
    %96 = arith.select %70, %90, %95 : vector<8x128xi1>, vector<8x128xf32>
    %cst_39 = arith.constant dense<0.000000e+00> : vector<8xf32>
    %97 = vector.multi_reduction <add>, %96, %cst_39 [1] : vector<8x128xf32> to vector<8xf32>
    %98 = vector.shape_cast %97 : vector<8xf32> to vector<8x1xf32>
    %cst_40 = arith.constant 1.000000e+00 : f32
    %99 = vector.shape_cast %98 : vector<8x1xf32> to vector<8x1xf32>
    %100 = vector.broadcast %99 : vector<8x1xf32> to vector<8x128xf32>
    %101 = vector.broadcast %cst_40 : f32 to vector<8x128xf32>
    %102 = arith.select %70, %100, %101 : vector<8x128xi1>, vector<8x128xf32>
    %103 = vector.shape_cast %94 : vector<8x1xf32> to vector<8x1xf32>
    %104 = vector.broadcast %103 : vector<8x1xf32> to vector<8x128xf32>
    %105 = arith.select %65, %104, %102 : vector<8x128xi1>, vector<8x128xf32>
    %106 = arith.divf %90, %105 : vector<8x128xf32>
    %107 = vector.shape_cast %106 : vector<8x128xf32> to vector<1x8x128xf32>
    %c0_41 = arith.constant 0 : index
    %c0_42 = arith.constant 0 : index
    %c0_43 = arith.constant 0 : index
    %108 = vector.load %arg11[%c0_41, %c0_42, %c0_43] : memref<1x8x128xf32, #tpu.memory_space<vmem>>, vector<1x8x128xf32>
    tpu.vector_store %arg11[%c0_41, %c0_42, %c0_43], %107 {strides = array<i32>} : memref<1x8x128xf32, #tpu.memory_space<vmem>>, vector<1x8x128xf32>,
    return
  }
  func.func @transform_0(%arg0: i32) -> (i32, i32) {
    %c0_i32 = arith.constant 0 : i32
    %c0_i32_0 = arith.constant 0 : i32
    %c0_i32_1 = arith.constant 0 : i32
    return %c0_i32, %c0_i32_0 : i32, i32
  }
  func.func @transform_1(%arg0: i32) -> (i32, i32) {
    %c0_i32 = arith.constant 0 : i32
    %c0_i32_0 = arith.constant 0 : i32
    %c0_i32_1 = arith.constant 0 : i32
    return %c0_i32, %c0_i32_0 : i32, i32
  }
  func.func @transform_2(%arg0: i32) -> (i32, i32, i32) {
    %c0_i32 = arith.constant 0 : i32
    %c0_i32_0 = arith.constant 0 : i32
    %c0_i32_1 = arith.constant 0 : i32
    return %arg0, %c0_i32, %c0_i32_0 : i32, i32, i32
  }
  func.func @transform_3(%arg0: i32) -> (i32, i32) {
    %c0_i32 = arith.constant 0 : i32
    %c0_i32_0 = arith.constant 0 : i32
    %c0_i32_1 = arith.constant 0 : i32
    return %c0_i32, %c0_i32_0 : i32, i32
  }
  func.func @transform_4(%arg0: i32) -> (i32, i32) {
    %c0_i32 = arith.constant 0 : i32
    %c0_i32_0 = arith.constant 0 : i32
    %c0_i32_1 = arith.constant 0 : i32
    return %c0_i32, %c0_i32_0 : i32, i32
  }
  func.func @transform_5(%arg0: i32) -> (i32, i32) {
    %c0_i32 = arith.constant 0 : i32
    %c0_i32_0 = arith.constant 0 : i32
    %c0_i32_1 = arith.constant 0 : i32
    return %c0_i32, %c0_i32_0 : i32, i32
  }
  func.func @transform_6(%arg0: i32) -> (i32, i32) {
    %c0_i32 = arith.constant 0 : i32
    %c0_i32_0 = arith.constant 0 : i32
    %c0_i32_1 = arith.constant 0 : i32
    return %c0_i32, %c0_i32_0 : i32, i32
  }
  func.func @transform_7(%arg0: i32) -> (i32, i32) {
    %c0_i32 = arith.constant 0 : i32
    %c0_i32_0 = arith.constant 0 : i32
    %c0_i32_1 = arith.constant 0 : i32
    return %c0_i32, %c0_i32_0 : i32, i32
  }
  func.func @transform_8(%arg0: i32) -> (i32, i32) {
    %c0_i32 = arith.constant 0 : i32
    %c0_i32_0 = arith.constant 0 : i32
    %c0_i32_1 = arith.constant 0 : i32
    return %c0_i32, %c0_i32_0 : i32, i32
  }
  func.func @transform_9(%arg0: i32) -> (i32, i32) {
    %c0_i32 = arith.constant 0 : i32
    %c0_i32_0 = arith.constant 0 : i32
    %c0_i32_1 = arith.constant 0 : i32
    return %c0_i32, %c0_i32_0 : i32, i32
  }
  func.func @transform_10(%arg0: i32) -> (i32, i32, i32) {
    %c0_i32 = arith.constant 0 : i32
    %c0_i32_0 = arith.constant 0 : i32
    %c0_i32_1 = arith.constant 0 : i32
    return %arg0, %c0_i32, %c0_i32_0 : i32, i32, i32
  }
}

</mosaic_0001>

<llo_original>
// kernel: ranker_forward.1
$region0: #{ranker_forward.1}
  #allocation0 [shape = 'u32[]', space=smem, size = 0x4, offset = 0x4, fixed_abs, tag = 'smem constant byte address 0x4 - core index']
  #allocation1 [shape = 'u32[144,128]{1,0:T(1,128)}', space=vmem, size = 0x12000, scoped, tag = 'internal scratch']
  %s0 = inlined_call_operand.vmem [shape: s32[8,2], index: 0, kind: input, shape index: {}]
  %s1 = inlined_call_operand.vmem [shape: f32[8,24], index: 1, kind: input, shape index: {}]
  %s2 = inlined_call_operand.vmem [shape: bf16[2,16,32], index: 2, kind: input, shape index: {}]
  %s3 = inlined_call_operand.vmem [shape: bf16[96,64], index: 3, kind: input, shape index: {}]
  %s4 = inlined_call_operand.vmem [shape: f32[24,64], index: 4, kind: input, shape index: {}]
  %s5 = inlined_call_operand.vmem [shape: f32[1,64], index: 5, kind: input, shape index: {}]
  %s6 = inlined_call_operand.vmem [shape: bf16[64,64], index: 6, kind: input, shape index: {}]
  %s7 = inlined_call_operand.vmem [shape: f32[1,64], index: 7, kind: input, shape index: {}]
  %s8 = inlined_call_operand.vmem [shape: bf16[64,128], index: 8, kind: input, shape index: {}]
  %s9 = inlined_call_operand.vmem [shape: f32[1,128], index: 9, kind: input, shape index: {}]
  %s10 = inlined_call_operand.vmem [shape: f32[2,8,128], index: 10, kind: output, shape index: {}]
  %s11 = sld [smem:[#allocation0]]
  $region73: #{ranker_forward.1} parent=0
    _
  %s13 = ssub.s32 1, %s11
  %s14 = scalar_select 0, %s13, %s11
  loop: start=0, step=1, limit=4
  $region2: #{ranker_forward.1} parent=0 // loop_pre_header
    _
  $region3: #{ranker_forward.1} parent=0 // loop_header
    %s16 = sphi 0, %s20
    %p17 = scmp.ge.s32.totalorder %s16, 4
    %s24 = sphi 0, %s24
    %s26 = sphi 0, %s24
    %s27 = sphi 0, %s26
    %s41 = sphi 0, %s27
    %s45 = sphi 0, %s45
    %s47 = sphi 0, %s45
    %s48 = sphi 0, %s47
    %s62 = sphi 0, %s48
    %s68 = sphi 0, %s70
    %s71 = sphi 0, %s68
    %s72 = sphi 0, %s71
    %s88 = sphi 0, %s72
    %s92 = sphi 0, %s92
    %s94 = sphi 0, %s92
    %s95 = sphi 0, %s94
    %s109 = sphi 0, %s95
    %s113 = sphi 0, %s113
    %s115 = sphi 0, %s113
    %s116 = sphi 0, %s115
    %s130 = sphi 0, %s116
    %s134 = sphi 0, %s134
    %s136 = sphi 0, %s134
    %s137 = sphi 0, %s136
    %s151 = sphi 0, %s137
    %s155 = sphi 0, %s155
    %s157 = sphi 0, %s155
    %s158 = sphi 0, %s157
    %s172 = sphi 0, %s158
    %s176 = sphi 0, %s176
    %s178 = sphi 0, %s176
    %s179 = sphi 0, %s178
    %s193 = sphi 0, %s179
    %s197 = sphi 0, %s197
    %s199 = sphi 0, %s197
    %s200 = sphi 0, %s199
    %s214 = sphi 0, %s200
    %s218 = sphi 0, %s218
    %s220 = sphi 0, %s218
    %s221 = sphi 0, %s220
    %s235 = sphi 0, %s221
    %s241 = sphi 0, %s243
    %s244 = sphi 0, %s241
    %s245 = sphi 0, %s244
    %s261 = sphi 0, %s245
  $region4: #{ranker_forward.1} parent=0 // loop_header_branch
    %19 = sbr.rel (%p17) target = $region8
  $region5: #{ranker_forward.1} parent=0 // loop_body
    %s21 = ssub.s32 %s16, 1
    %s22 = ssub.s32 %s16, 2
    %s23 = sadd.s32 %s16, 1
    %s25 = sadd.s32 %s24, 1
    %p28 = scmp.eq.s32.totalorder %s16, 1
    %p29 = scmp.ne.s32.totalorder %s24, %s26
    %p30 = scmp.eq.s32.totalorder %s16, 0
    %p31 = por %p29, %p30
    %p32 = scmp.ne.s32.totalorder %s24, %s26
    %p33 = scmp.eq.s32.totalorder %s21, 1
    %p34 = por %p32, %p33
    %p35 = scmp.ne.s32.totalorder %s26, %s27
    %p36 = scmp.eq.s32.totalorder %s21, 0
    %p37 = por %p35, %p36
    %p38 = scmp.ne.s32.totalorder %s26, %s27
    %p39 = scmp.eq.s32.totalorder %s22, 1
    %p40 = por %p38, %p39
    %p42 = scmp.ne.s32.totalorder %s27, %s41
    %p43 = scmp.eq.s32.totalorder %s22, 0
    %p44 = por %p42, %p43
    %s46 = sadd.s32 %s45, 1
    %p49 = scmp.eq.s32.totalorder %s16, 1
    %p50 = scmp.ne.s32.totalorder %s45, %s47
    %p51 = scmp.eq.s32.totalorder %s16, 0
    %p52 = por %p50, %p51
    %p53 = scmp.ne.s32.totalorder %s45, %s47
    %p54 = scmp.eq.s32.totalorder %s21, 1
    %p55 = por %p53, %p54
    %p56 = scmp.ne.s32.totalorder %s47, %s48
    %p57 = scmp.eq.s32.totalorder %s21, 0
    %p58 = por %p56, %p57
    %p59 = scmp.ne.s32.totalorder %s47, %s48
    %p60 = scmp.eq.s32.totalorder %s22, 1
    %p61 = por %p59, %p60
    %p63 = scmp.ne.s32.totalorder %s48, %s62
    %p64 = scmp.eq.s32.totalorder %s22, 0
    %p65 = por %p63, %p64
    %s66 = ssub.s32 %s16, %s23
    %p67 = scmp.eq.s32.totalorder %s66, 0
    %s69 = sadd.s32 %s68, 1
    %s70 = scalar_select %p67, %s68, %s69
    %p73 = pneg %p67
    %p74 = scmp.eq.s32.totalorder %s16, 1
    %p75 = por %p73, %p74
    %p76 = scmp.ne.s32.totalorder %s68, %s71
    %p77 = scmp.eq.s32.totalorder %s16, 0
    %p78 = por %p76, %p77
    %p79 = scmp.ne.s32.totalorder %s68, %s71
    %p80 = scmp.eq.s32.totalorder %s21, 1
    %p81 = por %p79, %p80
    %p82 = scmp.ne.s32.totalorder %s71, %s72
    %p83 = scmp.eq.s32.totalorder %s21, 0
    %p84 = por %p82, %p83
    %p85 = scmp.ne.s32.totalorder %s71, %s72
    %p86 = scmp.eq.s32.totalorder %s22, 1
    %p87 = por %p85, %p86
    %p89 = scmp.ne.s32.totalorder %s72, %s88
    %p90 = scmp.eq.s32.totalorder %s22, 0
    %p91 = por %p89, %p90
    %s93 = sadd.s32 %s92, 1
    %p96 = scmp.eq.s32.totalorder %s16, 1
    %p97 = scmp.ne.s32.totalorder %s92, %s94
    %p98 = scmp.eq.s32.totalorder %s16, 0
    %p99 = por %p97, %p98
    %p100 = scmp.ne.s32.totalorder %s92, %s94
    %p101 = scmp.eq.s32.totalorder %s21, 1
    %p102 = por %p100, %p101
    %p103 = scmp.ne.s32.totalorder %s94, %s95
    %p104 = scmp.eq.s32.totalorder %s21, 0
    %p105 = por %p103, %p104
    %p106 = scmp.ne.s32.totalorder %s94, %s95
    %p107 = scmp.eq.s32.totalorder %s22, 1
    %p108 = por %p106, %p107
    %p110 = scmp.ne.s32.totalorder %s95, %s109
    %p111 = scmp.eq.s32.totalorder %s22, 0
    %p112 = por %p110, %p111
    %s114 = sadd.s32 %s113, 1
    %p117 = scmp.eq.s32.totalorder %s16, 1
    %p118 = scmp.ne.s32.totalorder %s113, %s115
    %p119 = scmp.eq.s32.totalorder %s16, 0
    %p120 = por %p118, %p119
    %p121 = scmp.ne.s32.totalorder %s113, %s115
    %p122 = scmp.eq.s32.totalorder %s21, 1
    %p123 = por %p121, %p122
    %p124 = scmp.ne.s32.totalorder %s115, %s116
    %p125 = scmp.eq.s32.totalorder %s21, 0
    %p126 = por %p124, %p125
    %p127 = scmp.ne.s32.totalorder %s115, %s116
    %p128 = scmp.eq.s32.totalorder %s22, 1
    %p129 = por %p127, %p128
    %p131 = scmp.ne.s32.totalorder %s116, %s130
    %p132 = scmp.eq.s32.totalorder %s22, 0
    %p133 = por %p131, %p132
    %s135 = sadd.s32 %s134, 1
    %p138 = scmp.eq.s32.totalorder %s16, 1
    %p139 = scmp.ne.s32.totalorder %s134, %s136
    %p140 = scmp.eq.s32.totalorder %s16, 0
    %p141 = por %p139, %p140
    %p142 = scmp.ne.s32.totalorder %s134, %s136
    %p143 = scmp.eq.s32.totalorder %s21, 1
    %p144 = por %p142, %p143
    %p145 = scmp.ne.s32.totalorder %s136, %s137
    %p146 = scmp.eq.s32.totalorder %s21, 0
    %p147 = por %p145, %p146
    %p148 = scmp.ne.s32.totalorder %s136, %s137
    %p149 = scmp.eq.s32.totalorder %s22, 1
    %p150 = por %p148, %p149
    %p152 = scmp.ne.s32.totalorder %s137, %s151
    %p153 = scmp.eq.s32.totalorder %s22, 0
    %p154 = por %p152, %p153
    %s156 = sadd.s32 %s155, 1
    %p159 = scmp.eq.s32.totalorder %s16, 1
    %p160 = scmp.ne.s32.totalorder %s155, %s157
    %p161 = scmp.eq.s32.totalorder %s16, 0
    %p162 = por %p160, %p161
    %p163 = scmp.ne.s32.totalorder %s155, %s157
    %p164 = scmp.eq.s32.totalorder %s21, 1
    %p165 = por %p163, %p164
    %p166 = scmp.ne.s32.totalorder %s157, %s158
    %p167 = scmp.eq.s32.totalorder %s21, 0
    %p168 = por %p166, %p167
    %p169 = scmp.ne.s32.totalorder %s157, %s158
    %p170 = scmp.eq.s32.totalorder %s22, 1
    %p171 = por %p169, %p170
    %p173 = scmp.ne.s32.totalorder %s158, %s172
    %p174 = scmp.eq.s32.totalorder %s22, 0
    %p175 = por %p173, %p174
    %s177 = sadd.s32 %s176, 1
    %p180 = scmp.eq.s32.totalorder %s16, 1
    %p181 = scmp.ne.s32.totalorder %s176, %s178
    %p182 = scmp.eq.s32.totalorder %s16, 0
    %p183 = por %p181, %p182
    %p184 = scmp.ne.s32.totalorder %s176, %s178
    %p185 = scmp.eq.s32.totalorder %s21, 1
    %p186 = por %p184, %p185
    %p187 = scmp.ne.s32.totalorder %s178, %s179
    %p188 = scmp.eq.s32.totalorder %s21, 0
    %p189 = por %p187, %p188
    %p190 = scmp.ne.s32.totalorder %s178, %s179
    %p191 = scmp.eq.s32.totalorder %s22, 1
    %p192 = por %p190, %p191
    %p194 = scmp.ne.s32.totalorder %s179, %s193
    %p195 = scmp.eq.s32.totalorder %s22, 0
    %p196 = por %p194, %p195
    %s198 = sadd.s32 %s197, 1
    %p201 = scmp.eq.s32.totalorder %s16, 1
    %p202 = scmp.ne.s32.totalorder %s197, %s199
    %p203 = scmp.eq.s32.totalorder %s16, 0
    %p204 = por %p202, %p203
    %p205 = scmp.ne.s32.totalorder %s197, %s199
    %p206 = scmp.eq.s32.totalorder %s21, 1
    %p207 = por %p205, %p206
    %p208 = scmp.ne.s32.totalorder %s199, %s200
    %p209 = scmp.eq.s32.totalorder %s21, 0
    %p210 = por %p208, %p209
    %p211 = scmp.ne.s32.totalorder %s199, %s200
    %p212 = scmp.eq.s32.totalorder %s22, 1
    %p213 = por %p211, %p212
    %p215 = scmp.ne.s32.totalorder %s200, %s214
    %p216 = scmp.eq.s32.totalorder %s22, 0
    %p217 = por %p215, %p216
    %s219 = sadd.s32 %s218, 1
    %p222 = scmp.eq.s32.totalorder %s16, 1
    %p223 = scmp.ne.s32.totalorder %s218, %s220
    %p224 = scmp.eq.s32.totalorder %s16, 0
    %p225 = por %p223, %p224
    %p226 = scmp.ne.s32.totalorder %s218, %s220
    %p227 = scmp.eq.s32.totalorder %s21, 1
    %p228 = por %p226, %p227
    %p229 = scmp.ne.s32.totalorder %s220, %s221
    %p230 = scmp.eq.s32.totalorder %s21, 0
    %p231 = por %p229, %p230
    %p232 = scmp.ne.s32.totalorder %s220, %s221
    %p233 = scmp.eq.s32.totalorder %s22, 1
    %p234 = por %p232, %p233
    %p236 = scmp.ne.s32.totalorder %s221, %s235
    %p237 = scmp.eq.s32.totalorder %s22, 0
    %p238 = por %p236, %p237
    %s239 = ssub.s32 %s16, %s23
    %p240 = scmp.eq.s32.totalorder %s239, 0
    %s242 = sadd.s32 %s241, 1
    %s243 = scalar_select %p240, %s241, %s242
    %p246 = pneg %p240
    %p247 = scmp.eq.s32.totalorder %s16, 1
    %p248 = por %p246, %p247
    %p249 = scmp.ne.s32.totalorder %s241, %s244
    %p250 = scmp.eq.s32.totalorder %s16, 0
    %p251 = por %p249, %p250
    %p252 = scmp.ne.s32.totalorder %s241, %s244
    %p253 = scmp.eq.s32.totalorder %s21, 1
    %p254 = por %p252, %p253
    %p255 = scmp.ne.s32.totalorder %s244, %s245
    %p256 = scmp.eq.s32.totalorder %s21, 0
    %p257 = por %p255, %p256
    %p258 = scmp.ne.s32.totalorder %s244, %s245
    %p259 = scmp.eq.s32.totalorder %s22, 1
    %p260 = por %p258, %p259
    %p262 = scmp.ne.s32.totalorder %s245, %s261
    %p263 = scmp.eq.s32.totalorder %s22, 0
    %p264 = por %p262, %p263
    %p265 = scmp.le.s32.totalorder 1, %s16
    %p266 = scmp.lt.s32.totalorder %s16, 3
    %p267 = pnand %p265, %p266
    %p268 = pneg %p267
    // Predicated region
    $region9: #{ranker_forward.1} parent=5 // pred_check
      _
    $region10: #{ranker_forward.1} parent=5 // pred_check_branch
      %270 = sbr.rel (%p267) target = $region12
    $region11: #{ranker_forward.1} parent=5 // pred_region
      %s271 = ssub.s32 %s16, 1
      // Predicated region
      $region13: #{ranker_forward.1} parent=11 // pred_check
        %p272 = pneg %p37
      $region14: #{ranker_forward.1} parent=11 // pred_check_branch
        %274 = sbr.rel (%p272) target = $region16
      $region15: #{ranker_forward.1} parent=11 // pred_region
        _
      $region16: #{ranker_forward.1} parent=11 // pred_fallthru
        _
      // Predicated region
      $region17: #{ranker_forward.1} parent=11 // pred_check
        %p275 = pneg %p58
      $region18: #{ranker_forward.1} parent=11 // pred_check_branch
        %277 = sbr.rel (%p275) target = $region20
      $region19: #{ranker_forward.1} parent=11 // pred_region
        _
      $region20: #{ranker_forward.1} parent=11 // pred_fallthru
        _
      // Predicated region
      $region21: #{ranker_forward.1} parent=11 // pred_check
        %p278 = pneg %p105
      $region22: #{ranker_forward.1} parent=11 // pred_check_branch
        %280 = sbr.rel (%p278) target = $region24
      $region23: #{ranker_forward.1} parent=11 // pred_region
        _
      $region24: #{ranker_forward.1} parent=11 // pred_fallthru
        _
      // Predicated region
      $region25: #{ranker_forward.1} parent=11 // pred_check
        %p281 = pneg %p126
      $region26: #{ranker_forward.1} parent=11 // pred_check_branch
        %283 = sbr.rel (%p281) target = $region28
      $region27: #{ranker_forward.1} parent=11 // pred_region
        _
      $region28: #{ranker_forward.1} parent=11 // pred_fallthru
        _
      // Predicated region
      $region29: #{ranker_forward.1} parent=11 // pred_check
        %p284 = pneg %p147
      $region30: #{ranker_forward.1} parent=11 // pred_check_branch
        %286 = sbr.rel (%p284) target = $region32
      $region31: #{ranker_forward.1} parent=11 // pred_region
        _
      $region32: #{ranker_forward.1} parent=11 // pred_fallthru
        _
      // Predicated region
      $region33: #{ranker_forward.1} parent=11 // pred_check
        %p287 = pneg %p168
      $region34: #{ranker_forward.1} parent=11 // pred_check_branch
        %289 = sbr.rel (%p287) target = $region36
      $region35: #{ranker_forward.1} parent=11 // pred_region
        _
      $region36: #{ranker_forward.1} parent=11 // pred_fallthru
        _
      // Predicated region
      $region37: #{ranker_forward.1} parent=11 // pred_check
        %p290 = pneg %p189
      $region38: #{ranker_forward.1} parent=11 // pred_check_branch
        %292 = sbr.rel (%p290) target = $region40
      $region39: #{ranker_forward.1} parent=11 // pred_region
        _
      $region40: #{ranker_forward.1} parent=11 // pred_fallthru
        _
      // Predicated region
      $region41: #{ranker_forward.1} parent=11 // pred_check
        %p293 = pneg %p210
      $region42: #{ranker_forward.1} parent=11 // pred_check_branch
        %295 = sbr.rel (%p293) target = $region44
      $region43: #{ranker_forward.1} parent=11 // pred_region
        _
      $region44: #{ranker_forward.1} parent=11 // pred_fallthru
        _
      // Predicated region
      $region45: #{ranker_forward.1} parent=11 // pred_check
        %p296 = pneg %p231
      $region46: #{ranker_forward.1} parent=11 // pred_check_branch
        %298 = sbr.rel (%p296) target = $region48
      $region47: #{ranker_forward.1} parent=11 // pred_region
        _
      $region48: #{ranker_forward.1} parent=11 // pred_fallthru
        _
    $region12: #{ranker_forward.1} parent=5 // pred_fallthru
      _
    %p299 = scmp.lt.s32.totalorder %s16, 2
    // Predicated region
    $region49: #{ranker_forward.1} parent=5 // pred_check
      %p300 = pneg %p299
    $region50: #{ranker_forward.1} parent=5 // pred_check_branch
      %302 = sbr.rel (%p300) target = $region52
    $region51: #{ranker_forward.1} parent=5 // pred_region
      // Predicated region
      $region53: #{ranker_forward.1} parent=51 // pred_check
        %p303 = pneg %p78
      $region54: #{ranker_forward.1} parent=51 // pred_check_branch
        %305 = sbr.rel (%p303) target = $region56
      $region55: #{ranker_forward.1} parent=51 // pred_region
        %p306 = scmp.lt.s32.totalorder %s16, 1
        %s307 = scalar_select %p306, %s16, 1
        %s308 = smul.addr %s307, 2
        %s309 = smul.addr %s308, 4
        %s310 = scalar_lea.vmem %s2, %s309
      $region56: #{ranker_forward.1} parent=51 // pred_fallthru
        _
    $region52: #{ranker_forward.1} parent=5 // pred_fallthru
      _
    %p311 = scmp.le.s32.totalorder 1, %s16
    %p312 = scmp.lt.s32.totalorder %s16, 3
    %p313 = pnand %p311, %p312
    %p314 = pneg %p313
    // Predicated region
    $region57: #{ranker_forward.1} parent=5 // pred_check
      _
    $region58: #{ranker_forward.1} parent=5 // pred_check_branch
      %316 = sbr.rel (%p313) target = $region60
    $region59: #{ranker_forward.1} parent=5 // pred_region
      %s317 = ssub.s32 %s16, 1
      %p318 = pneg %p37
      %p319 = pneg %p34
      %p320 = pneg %p58
      %p321 = pneg %p55
      %p322 = scmp.lt.s32.totalorder %s21, 1
      %s323 = scalar_select %p322, %s21, 1
      %s324 = smul.addr %s323, 2
      %s325 = smul.addr %s324, 4
      %s326 = scalar_lea.vmem %s2, %s325
      %p327 = pneg %p84
      %p328 = pneg %p81
      %p329 = pneg %p105
      %p330 = pneg %p102
      %p331 = pneg %p126
      %p332 = pneg %p123
      %p333 = pneg %p147
      %p334 = pneg %p144
      %p335 = pneg %p168
      %p336 = pneg %p165
      %p337 = pneg %p189
      %p338 = pneg %p186
      %p339 = pneg %p210
      %p340 = pneg %p207
      %p341 = pneg %p231
      %p342 = pneg %p228
      %p343 = pneg %p257
      %p344 = pneg %p254
      %p345 = scmp.lt.s32.totalorder %s21, 1
      %s346 = scalar_select %p345, %s21, 1
      %s347 = smul.addr %s346, 8
      %s348 = scalar_lea.vmem %s10, %s347
      %p349 = scmp.lt.s32.totalorder %s21, 1
      %s350 = scalar_select %p349, %s21, 1
      %s351 = smul.addr %s350, 2
      %s352 = smul.addr %s351, 4
      %s353 = scalar_lea.vmem %s2, %s352
      %p354 = scmp.lt.s32.totalorder %s21, 1
      %s355 = scalar_select %p354, %s21, 1
      %s356 = smul.addr %s355, 8
      %s357 = scalar_lea.vmem %s10, %s356
      %v359 = vld [vmem:[%s0] sm:$0xff]
      %360 = vrot.lane.b32.xlu0 %v359, 127
      %v361 = vpop.permute.xlu0 %360
      %vm362 = vcmp.lt.s32.totalorder %v359, %v361
      %v363 = vsel %vm362, %v359, %v361
      %vm364 = vcmp.gt.s32.totalorder %v359, %v361
      %v365 = vsel %vm364, %v359, %v361
      %v366 = vlaneseq
      %v367 = vand.u32 %v366, 127
      %368 = vset.pattern.permute.xlu0 0
      %369 = vperm.xlu0 %368, %v363
      %v370 = vpop.permute.xlu0 %369
      %vm371 = vcmp.ge.s32.totalorder %v367, %v370
      %372 = vset.pattern.permute.xlu0 0
      %373 = vperm.xlu0 %372, %v365
      %v374 = vpop.permute.xlu0 %373
      %vm375 = vcmp.le.s32.totalorder %v367, %v374
      %vm376 = vmand %vm371, %vm375
      %v377 = vsub.s32 %v365, %v363
      %v378 = vadd.s32 %v377, 1
      %v379 = vcvt.s32.f32 %v378
      %v380 = vrcp.pop %v379
      %v381 = vmul.f32 1.0, %v380
      %383 = vset.pattern.permute.xlu0 0
      %384 = vperm.xlu0 %383, %v381
      %v385 = vpop.permute.xlu0 %384
      %v387 = vsel %vm376, %v385, 0.0
      %388 = vset.pattern.permute.xlu0 0
      %389 = vperm.xlu0 %388, %v359
      %v390 = vpop.permute.xlu0 %389
      %vm391 = vcmp.eq.s32.totalorder %v367, %v390
      %v392 = vsel %vm391, 1, 0
      %v393 = vcvt.s32.f32 %v392
      %394 = vset.pattern.permute.xlu0 1
      %395 = vperm.xlu0 %394, %v359
      %v396 = vpop.permute.xlu0 %395
      %vm397 = vcmp.eq.s32.totalorder %v367, %v396
      %v398 = vsel %vm397, 1, 0
      %v399 = vcvt.s32.f32 %v398
      %v400 = vpack.c.bf16 %v393, %v387
      %v401 = vpack.c.bf16 %v399, %v399
      %v402 = vld [vmem:[%s353] sm:$0xf]
      %v403 = vld [vmem:[%s353 + $0x4] sm:$0xf]
      %v406 = vunpack.c.l.b16 %v402
      %v407 = vunpack.c.l.b16 %v403
      %v408 = vpack.c.b16 %v407, %v406
      %vm410 = vcmask 130048
      %v412 = vsel %vm410, %v400, 0
      %v415 = vsel %vm410, %v401, 0
      %417 = vmatprep.subr.bf16.mxu0 0
      %418 = vmatpush1.bf16.msra.mxu0 %v408
      %419 = vmatprep.subr.bf16.mxu0 0
      %420 = vmatpush1.bf16.msra.mxu0 0
      %421 = vmatprep.subr.bf16.mxu0 0
      %422 = vmatpush1.bf16.msra.mxu0 0
      %423 = vmatprep.subr.bf16.mxu0 0
      %424 = vmatpush1.bf16.msra.mxu0 0
      %425 = vmatprep.subr.bf16.mxu0 0
      %426 = vmatpush1.bf16.msra.mxu0 0
      %427 = vmatprep.subr.bf16.mxu0 0
      %428 = vmatpush1.bf16.msra.mxu0 0
      %429 = vmatprep.subr.bf16.mxu0 0
      %430 = vmatpush1.bf16.msra.mxu0 0
      %431 = vmatprep.subr.bf16.mxu0 0
      %432 = vmatpush1.bf16.msra.mxu0 0
      %433 = vmatprep.subr.bf16.mxu0 0
      %434 = vmatpush1.bf16.msra.mxu0 0
      %435 = vmatprep.subr.bf16.mxu0 0
      %436 = vmatpush1.bf16.msra.mxu0 0
      %437 = vmatprep.subr.bf16.mxu0 0
      %438 = vmatpush1.bf16.msra.mxu0 0
      %439 = vmatprep.subr.bf16.mxu0 0
      %440 = vmatpush1.bf16.msra.mxu0 0
      %441 = vmatprep.subr.bf16.mxu0 0
      %442 = vmatpush1.bf16.msra.mxu0 0
      %443 = vmatprep.subr.bf16.mxu0 0
      %444 = vmatpush1.bf16.msra.mxu0 0
      %445 = vmatprep.subr.bf16.mxu0 0
      %446 = vmatpush1.bf16.msra.mxu0 0
      %447 = vmatprep.subr.bf16.mxu0 0
      %448 = vmatpush1.bf16.msra.mxu0 0
      %449 = vmatprep.mubr.bf16.mxu0 0
      %450 = vmatmul.mubr.bf16.gmra.mrb[0].mxu0 %v412
      %v451 = vpop.f32.mrb[0].mxu0
      %v452 = vadd.f32 0.0, %v451
      %v453 = vpop.f32.mrb[0].mxu0
      %v454 = vpop.f32.mrb[0].mxu0
      %v455 = vadd.f32 0.0, %v454
      %v456 = vpop.f32.mrb[0].mxu0
      %457 = vmatprep.mubr.bf16.mxu0 0
      %458 = vmatmul.mubr.bf16.gmra.mrb[0].mxu0 %v415
      %v459 = vpop.f32.mrb[0].mxu0
      %v460 = vadd.f32 0.0, %v459
      %v461 = vpop.f32.mrb[0].mxu0
      %v462 = vpop.f32.mrb[0].mxu0
      %v463 = vpop.f32.mrb[0].mxu0
      %464 = vdwg.mxu0
      %466 = vrot.lane.b32.xlu0 %v455, 32
      %v467 = vpop.permute.xlu0 %466
      %470 = vrot.lane.b32.xlu0 %v460, 64
      %v471 = vpop.permute.xlu0 %470
      %vm473 = vcmask 261120
      %v474 = vsel %vm473, %v452, %v467
      %vm475 = vcmask 523264
      %v476 = vsel %vm475, %v474, %v471
      %v477 = vpack.c.bf16 %v476, %v476
      %v478 = vld [vmem:[%s3] sm:$0xf]
      %v479 = vld [vmem:[%s3 + $0x4] sm:$0xf]
      %v480 = vld [vmem:[%s3 + $0x8] sm:$0xf]
      %v481 = vld [vmem:[%s3 + $0xc] sm:$0xf]
      %v482 = vld [vmem:[%s3 + $0x10] sm:$0xf]
      %v483 = vld [vmem:[%s3 + $0x14] sm:$0xf]
      %v484 = vld [vmem:[%s3 + $0x18] sm:$0xf]
      %v485 = vld [vmem:[%s3 + $0x1c] sm:$0xf]
      %v486 = vld [vmem:[%s3 + $0x20] sm:$0xf]
      %v487 = vld [vmem:[%s3 + $0x24] sm:$0xf]
      %v488 = vld [vmem:[%s3 + $0x28] sm:$0xf]
      %v489 = vld [vmem:[%s3 + $0x2c] sm:$0xf]
      %v490 = vld [vmem:[%s1] sm:$0xff]
      %v491 = vld [vmem:[%s4] sm:$0xff]
      %v492 = vld [vmem:[%s4 + $0x8] sm:$0xff]
      %v493 = vld [vmem:[%s4 + $0x10] sm:$0xff]
      %vm494 = vcmask 195584
      %v496 = vsel %vm494, %v490, 0
      %498 = vmatprep.subr.mxu0 0.0
      %499 = vmatpush1.msra.mxu0 %v491
      %500 = vmatprep.subr.mxu0 0.0
      %501 = vmatpush1.msra.mxu0 %v492
      %502 = vmatprep.subr.mxu0 0.0
      %503 = vmatpush1.msra.mxu0 %v493
      %504 = vmatprep.subr.mxu0 0.0
      %505 = vmatpush1.msra.mxu0 0.0
      %506 = vmatprep.subr.mxu0 0.0
      %507 = vmatpush1.msra.mxu0 0.0
      %508 = vmatprep.subr.mxu0 0.0
      %509 = vmatpush1.msra.mxu0 0.0
      %510 = vmatprep.subr.mxu0 0.0
      %511 = vmatpush1.msra.mxu0 0.0
      %512 = vmatprep.subr.mxu0 0.0
      %513 = vmatpush1.msra.mxu0 0.0
      %514 = vmatprep.subr.mxu0 0.0
      %515 = vmatpush1.msra.mxu0 0.0
      %516 = vmatprep.subr.mxu0 0.0
      %517 = vmatpush1.msra.mxu0 0.0
      %518 = vmatprep.subr.mxu0 0.0
      %519 = vmatpush1.msra.mxu0 0.0
      %520 = vmatprep.subr.mxu0 0.0
      %521 = vmatpush1.msra.mxu0 0.0
      %522 = vmatprep.subr.mxu0 0.0
      %523 = vmatpush1.msra.mxu0 0.0
      %524 = vmatprep.subr.mxu0 0.0
      %525 = vmatpush1.msra.mxu0 0.0
      %526 = vmatprep.subr.mxu0 0.0
      %527 = vmatpush1.msra.mxu0 0.0
      %528 = vmatprep.subr.mxu0 0.0
      %529 = vmatpush1.msra.mxu0 0.0
      %530 = vmatprep.subr.mxu0 0.0
      %531 = vmatpush1.msra.mxu0 0.0
      %532 = vmatprep.subr.mxu0 0.0
      %533 = vmatpush1.msra.mxu0 0.0
      %534 = vmatprep.subr.mxu0 0.0
      %535 = vmatpush1.msra.mxu0 0.0
      %536 = vmatprep.subr.mxu0 0.0
      %537 = vmatpush1.msra.mxu0 0.0
      %538 = vmatprep.subr.mxu0 0.0
      %539 = vmatpush1.msra.mxu0 0.0
      %540 = vmatprep.subr.mxu0 0.0
      %541 = vmatpush1.msra.mxu0 0.0
      %542 = vmatprep.subr.mxu0 0.0
      %543 = vmatpush1.msra.mxu0 0.0
      %544 = vmatprep.subr.mxu0 0.0
      %545 = vmatpush1.msra.mxu0 0.0
      %546 = vmatprep.subr.mxu0 0.0
      %547 = vmatpush1.msra.mxu0 0.0
      %548 = vmatprep.subr.mxu0 0.0
      %549 = vmatpush1.msra.mxu0 0.0
      %550 = vmatprep.subr.mxu0 0.0
      %551 = vmatpush1.msra.mxu0 0.0
      %552 = vmatprep.subr.mxu0 0.0
      %553 = vmatpush1.msra.mxu0 0.0
      %554 = vmatprep.subr.mxu0 0.0
      %555 = vmatpush1.msra.mxu0 0.0
      %556 = vmatprep.subr.mxu0 0.0
      %557 = vmatpush1.msra.mxu0 0.0
      %558 = vmatprep.subr.mxu0 0.0
      %559 = vmatpush1.msra.mxu0 0.0
      %560 = vmatprep.subr.mxu0 0.0
      %561 = vmatpush1.msra.mxu0 0.0
      %562 = vmatprep.mubr.f32.mxu0 0.0
      %563 = vmatmul.mubr.f32.gmra.mrb[0].mxu0 %v496
      %v564 = vpop.f32.mrb[0].mxu0
      %v565 = vadd.f32 0.0, %v564
      %v566 = vpop.f32.mrb[0].mxu0
      %567 = vdwg.mxu0
      %v580 = vunpack.c.l.b16 %v478
      %v581 = vunpack.c.l.b16 %v479
      %v582 = vunpack.c.l.b16 %v480
      %v583 = vunpack.c.l.b16 %v481
      %v584 = vunpack.c.l.b16 %v482
      %v585 = vunpack.c.l.b16 %v483
      %v586 = vunpack.c.l.b16 %v484
      %v587 = vunpack.c.l.b16 %v485
      %v588 = vunpack.c.l.b16 %v486
      %v589 = vunpack.c.l.b16 %v487
      %v590 = vunpack.c.l.b16 %v488
      %v591 = vunpack.c.l.b16 %v489
      %v592 = vpack.c.b16 %v581, %v580
      %v593 = vpack.c.b16 %v583, %v582
      %v594 = vpack.c.b16 %v585, %v584
      %v595 = vpack.c.b16 %v587, %v586
      %v596 = vpack.c.b16 %v589, %v588
      %v597 = vpack.c.b16 %v591, %v590
      %vm604 = vcmask 785408
      %v606 = vsel %vm604, %v477, 0
      %608 = vmatprep.subr.bf16.mxu0 0
      %609 = vmatpush1.bf16.msra.mxu0 %v592
      %610 = vmatprep.subr.bf16.mxu0 0
      %611 = vmatpush1.bf16.msra.mxu0 %v593
      %612 = vmatprep.subr.bf16.mxu0 0
      %613 = vmatpush1.bf16.msra.mxu0 %v594
      %614 = vmatprep.subr.bf16.mxu0 0
      %615 = vmatpush1.bf16.msra.mxu0 %v595
      %616 = vmatprep.subr.bf16.mxu0 0
      %617 = vmatpush1.bf16.msra.mxu0 %v596
      %618 = vmatprep.subr.bf16.mxu0 0
      %619 = vmatpush1.bf16.msra.mxu0 %v597
      %620 = vmatprep.subr.bf16.mxu0 0
      %621 = vmatpush1.bf16.msra.mxu0 0
      %622 = vmatprep.subr.bf16.mxu0 0
      %623 = vmatpush1.bf16.msra.mxu0 0
      %624 = vmatprep.subr.bf16.mxu0 0
      %625 = vmatpush1.bf16.msra.mxu0 0
      %626 = vmatprep.subr.bf16.mxu0 0
      %627 = vmatpush1.bf16.msra.mxu0 0
      %628 = vmatprep.subr.bf16.mxu0 0
      %629 = vmatpush1.bf16.msra.mxu0 0
      %630 = vmatprep.subr.bf16.mxu0 0
      %631 = vmatpush1.bf16.msra.mxu0 0
      %632 = vmatprep.subr.bf16.mxu0 0
      %633 = vmatpush1.bf16.msra.mxu0 0
      %634 = vmatprep.subr.bf16.mxu0 0
      %635 = vmatpush1.bf16.msra.mxu0 0
      %636 = vmatprep.subr.bf16.mxu0 0
      %637 = vmatpush1.bf16.msra.mxu0 0
      %638 = vmatprep.subr.bf16.mxu0 0
      %639 = vmatpush1.bf16.msra.mxu0 0
      %640 = vmatprep.mubr.bf16.mxu0 0
      %641 = vmatmul.mubr.bf16.gmra.mrb[0].mxu0 %v606
      %v642 = vpop.f32.mrb[0].mxu0
      %v643 = vadd.f32 %v565, %v642
      %v644 = vpop.f32.mrb[0].mxu0
      %v645 = vpop.f32.mrb[0].mxu0
      %v646 = vpop.f32.mrb[0].mxu0
      %647 = vdwg.mxu0
      %v648 = vld [vmem:[%s5] sm:$0x1]
      %v650 = vlaneseq
      %v651 = vshrl.u32 %v650, 7
      %v652 = vsub.s32 0, %v651
      %v653 = vrot.slane %v648, %v652
      %v655 = vadd.f32 %v643, %v653
      %v656 = vmax.f32 %v655, 0.0
      %v657 = vpack.c.bf16 %v656, %v656
      %v658 = vld [vmem:[%s6] sm:$0xf]
      %v659 = vld [vmem:[%s6 + $0x4] sm:$0xf]
      %v660 = vld [vmem:[%s6 + $0x8] sm:$0xf]
      %v661 = vld [vmem:[%s6 + $0xc] sm:$0xf]
      %v662 = vld [vmem:[%s6 + $0x10] sm:$0xf]
      %v663 = vld [vmem:[%s6 + $0x14] sm:$0xf]
      %v664 = vld [vmem:[%s6 + $0x18] sm:$0xf]
      %v665 = vld [vmem:[%s6 + $0x1c] sm:$0xf]
      %v666 = vld [vmem:[%s7] sm:$0x1]
      %v668 = vlaneseq
      %v669 = vshrl.u32 %v668, 7
      %v670 = vsub.s32 0, %v669
      %v671 = vrot.slane %v666, %v670
      %v681 = vunpack.c.l.b16 %v658
      %v682 = vunpack.c.l.b16 %v659
      %v683 = vunpack.c.l.b16 %v660
      %v684 = vunpack.c.l.b16 %v661
      %v685 = vunpack.c.l.b16 %v662
      %v686 = vunpack.c.l.b16 %v663
      %v687 = vunpack.c.l.b16 %v664
      %v688 = vunpack.c.l.b16 %v665
      %v689 = vpack.c.b16 %v682, %v681
      %v690 = vpack.c.b16 %v684, %v683
      %v691 = vpack.c.b16 %v686, %v685
      %v692 = vpack.c.b16 %v688, %v687
      %v698 = vsel %vm475, %v657, 0
      %700 = vmatprep.subr.bf16.mxu0 0
      %701 = vmatpush1.bf16.msra.mxu0 %v689
      %702 = vmatprep.subr.bf16.mxu0 0
      %703 = vmatpush1.bf16.msra.mxu0 %v690
      %704 = vmatprep.subr.bf16.mxu0 0
      %705 = vmatpush1.bf16.msra.mxu0 %v691
      %706 = vmatprep.subr.bf16.mxu0 0
      %707 = vmatpush1.bf16.msra.mxu0 %v692
      %708 = vmatprep.subr.bf16.mxu0 0
      %709 = vmatpush1.bf16.msra.mxu0 0
      %710 = vmatprep.subr.bf16.mxu0 0
      %711 = vmatpush1.bf16.msra.mxu0 0
      %712 = vmatprep.subr.bf16.mxu0 0
      %713 = vmatpush1.bf16.msra.mxu0 0
      %714 = vmatprep.subr.bf16.mxu0 0
      %715 = vmatpush1.bf16.msra.mxu0 0
      %716 = vmatprep.subr.bf16.mxu0 0
      %717 = vmatpush1.bf16.msra.mxu0 0
      %718 = vmatprep.subr.bf16.mxu0 0
      %719 = vmatpush1.bf16.msra.mxu0 0
      %720 = vmatprep.subr.bf16.mxu0 0
      %721 = vmatpush1.bf16.msra.mxu0 0
      %722 = vmatprep.subr.bf16.mxu0 0
      %723 = vmatpush1.bf16.msra.mxu0 0
      %724 = vmatprep.subr.bf16.mxu0 0
      %725 = vmatpush1.bf16.msra.mxu0 0
      %726 = vmatprep.subr.bf16.mxu0 0
      %727 = vmatpush1.bf16.msra.mxu0 0
      %728 = vmatprep.subr.bf16.mxu0 0
      %729 = vmatpush1.bf16.msra.mxu0 0
      %730 = vmatprep.subr.bf16.mxu0 0
      %731 = vmatpush1.bf16.msra.mxu0 0
      %732 = vmatprep.mubr.bf16.mxu0 0
      %733 = vmatmul.mubr.bf16.gmra.mrb[0].mxu0 %v698
      %v734 = vpop.f32.mrb[0].mxu0
      %v735 = vadd.f32 %v671, %v734
      %v736 = vpop.f32.mrb[0].mxu0
      %v737 = vpop.f32.mrb[0].mxu0
      %v738 = vpop.f32.mrb[0].mxu0
      %739 = vdwg.mxu0
      %v740 = vmax.f32 %v735, 0.0
      %v741 = vpack.c.bf16 %v740, %v740
      %v742 = vld [vmem:[%s8] sm:$0xf]
      %v743 = vld [vmem:[%s8 + $0x4] sm:$0xf]
      %v744 = vld [vmem:[%s8 + $0x8] sm:$0xf]
      %v745 = vld [vmem:[%s8 + $0xc] sm:$0xf]
      %v746 = vld [vmem:[%s8 + $0x10] sm:$0xf]
      %v747 = vld [vmem:[%s8 + $0x14] sm:$0xf]
      %v748 = vld [vmem:[%s8 + $0x18] sm:$0xf]
      %v749 = vld [vmem:[%s8 + $0x1c] sm:$0xf]
      %v750 = vld [vmem:[%s9] sm:$0x1]
      %v752 = vlaneseq
      %v753 = vshrl.u32 %v752, 7
      %v754 = vsub.s32 0, %v753
      %v755 = vrot.slane %v750, %v754
      %v765 = vunpack.c.l.b16 %v742
      %v766 = vunpack.c.l.b16 %v743
      %v767 = vunpack.c.l.b16 %v744
      %v768 = vunpack.c.l.b16 %v745
      %v769 = vunpack.c.l.b16 %v746
      %v770 = vunpack.c.l.b16 %v747
      %v771 = vunpack.c.l.b16 %v748
      %v772 = vunpack.c.l.b16 %v749
      %v773 = vpack.c.b16 %v766, %v765
      %v774 = vpack.c.b16 %v768, %v767
      %v775 = vpack.c.b16 %v770, %v769
      %v776 = vpack.c.b16 %v772, %v771
      %v782 = vsel %vm475, %v741, 0
      %784 = vmatprep.subr.bf16.mxu0 0
      %785 = vmatpush1.bf16.msra.mxu0 %v773
      %786 = vmatprep.subr.bf16.mxu0 0
      %787 = vmatpush1.bf16.msra.mxu0 %v774
      %788 = vmatprep.subr.bf16.mxu0 0
      %789 = vmatpush1.bf16.msra.mxu0 %v775
      %790 = vmatprep.subr.bf16.mxu0 0
      %791 = vmatpush1.bf16.msra.mxu0 %v776
      %792 = vmatprep.subr.bf16.mxu0 0
      %793 = vmatpush1.bf16.msra.mxu0 0
      %794 = vmatprep.subr.bf16.mxu0 0
      %795 = vmatpush1.bf16.msra.mxu0 0
      %796 = vmatprep.subr.bf16.mxu0 0
      %797 = vmatpush1.bf16.msra.mxu0 0
      %798 = vmatprep.subr.bf16.mxu0 0
      %799 = vmatpush1.bf16.msra.mxu0 0
      %800 = vmatprep.subr.bf16.mxu0 0
      %801 = vmatpush1.bf16.msra.mxu0 0
      %802 = vmatprep.subr.bf16.mxu0 0
      %803 = vmatpush1.bf16.msra.mxu0 0
      %804 = vmatprep.subr.bf16.mxu0 0
      %805 = vmatpush1.bf16.msra.mxu0 0
      %806 = vmatprep.subr.bf16.mxu0 0
      %807 = vmatpush1.bf16.msra.mxu0 0
      %808 = vmatprep.subr.bf16.mxu0 0
      %809 = vmatpush1.bf16.msra.mxu0 0
      %810 = vmatprep.subr.bf16.mxu0 0
      %811 = vmatpush1.bf16.msra.mxu0 0
      %812 = vmatprep.subr.bf16.mxu0 0
      %813 = vmatpush1.bf16.msra.mxu0 0
      %814 = vmatprep.subr.bf16.mxu0 0
      %815 = vmatpush1.bf16.msra.mxu0 0
      %816 = vmatprep.mubr.bf16.mxu0 0
      %817 = vmatmul.mubr.bf16.gmra.mrb[0].mxu0 %v782
      %v818 = vpop.f32.mrb[0].mxu0
      %v819 = vadd.f32 %v755, %v818
      %v820 = vpop.f32.mrb[0].mxu0
      %v821 = vpop.f32.mrb[0].mxu0
      %v822 = vpop.f32.mrb[0].mxu0
      %823 = vdwg.mxu0
      %vm824 = vcmp.lt.s32.totalorder %v367, 4
      %vm825 = vcmp.ge.s32.totalorder %v367, 4
      %vm826 = vcmp.lt.s32.totalorder %v367, 10
      %vm827 = vmand %vm825, %vm826
      %vm828 = vmor %vm824, %vm827
      %v829 = vsel %vm824, %v819, -1e+30
      %830 = vmax.xlane.f32.xlu0 %v829
      %v831 = vpop.xlane.xlu0 %830
      %v832 = vsel %vm827, %v819, -1e+30
      %833 = vmax.xlane.f32.xlu0 %v832
      %v834 = vpop.xlane.xlu0 %833
      %v835 = vsel %vm827, %v834, 0.0
      %v836 = vsel %vm824, %v831, %v835
      %v837 = vsub.f32 %v819, %v836
      %v838 = vmul.f32 %v837, 1.442695
      %v839 = vpow.pop %v838
      %v840 = vsel %vm828, %v839, 0.0
      %v841 = vsel %vm824, %v840, 0.0
      %842 = vadd.xlane.f32.xlu0 %v841
      %v843 = vpop.xlane.xlu0 %842
      %v844 = vsel %vm827, %v840, 0.0
      %845 = vadd.xlane.f32.xlu0 %v844
      %v846 = vpop.xlane.xlu0 %845
      %v847 = vsel %vm827, %v846, 1.0
      %v848 = vsel %vm824, %v843, %v847
      %v849 = vrcp.pop %v848
      %v850 = vmul.f32 %v840, %v849
      %851 = vst [vmem:[%s357] sm:$0xff] %v850
      %p852 = scmp.lt.s32.totalorder %s21, 1
      %s853 = scalar_select %p852, %s21, 1
      %s854 = smul.addr %s853, 8
      %s855 = scalar_lea.vmem %s10, %s854
      // Predicated region
      $region61: #{ranker_forward.1} parent=59 // pred_check
        %p856 = pneg %p254
      $region62: #{ranker_forward.1} parent=59 // pred_check_branch
        %858 = sbr.rel (%p856) target = $region64
      $region63: #{ranker_forward.1} parent=59 // pred_region
        _
      $region64: #{ranker_forward.1} parent=59 // pred_fallthru
        _
    $region60: #{ranker_forward.1} parent=5 // pred_fallthru
      _
    %p859 = scmp.le.s32.totalorder 2, %s16
    // Predicated region
    $region65: #{ranker_forward.1} parent=5 // pred_check
      %p860 = pneg %p859
    $region66: #{ranker_forward.1} parent=5 // pred_check_branch
      %862 = sbr.rel (%p860) target = $region68
    $region67: #{ranker_forward.1} parent=5 // pred_region
      %s863 = ssub.s32 %s16, 2
      // Predicated region
      $region69: #{ranker_forward.1} parent=67 // pred_check
        %p864 = pneg %p260
      $region70: #{ranker_forward.1} parent=67 // pred_check_branch
        %866 = sbr.rel (%p864) target = $region72
      $region71: #{ranker_forward.1} parent=67 // pred_region
        %p867 = scmp.lt.s32.totalorder %s22, 1
        %s868 = scalar_select %p867, %s22, 1
        %s869 = smul.addr %s868, 8
        %s870 = scalar_lea.vmem %s10, %s869
      $region72: #{ranker_forward.1} parent=67 // pred_fallthru
        _
    $region68: #{ranker_forward.1} parent=5 // pred_fallthru
      _
  $region6: #{ranker_forward.1} parent=0 // loop_footer
    %s20 = sadd.s32 1, %s16
  $region7: #{ranker_forward.1} parent=0 // loop_footer_branch
    %15 = sbr.rel target = $region3
  $region8: #{ranker_forward.1} parent=0 // loop_exit
    _

</llo_original>
